<compile_context>
chip_gen: v7x
topology: tpu7x:2x2x1
jax: 0.10.0
libtpu: 0.0.40
codegen_flags: <defaults>
</compile_context>

<pallas_src>
import jax
import jax.numpy as jnp
import numpy as np
from jax.experimental import pallas as pl
from jax.experimental.pallas import tpu as pltpu

LN_EPS = 1e-5


def ln_proj_kernel(x_ref, g_ref, beta_ref, wq_ref, wk_ref, bq_ref, bk_ref,
                   wd_ref, b2_ref, q_ref, k_ref, qd_ref, kd_ref):
    # x: (1, L, D)  g/beta: (1, D)  wq/wk: (D, I)  bq/bk: (1, I)
    # wd: (I, P)    b2: (1, P)
    # outputs: q/k: (1, L, I)   qd/kd: (1, L, P)
    x = x_ref[0]                                        # (L, D)
    mu = jnp.mean(x, axis=-1, keepdims=True)
    xc = x - mu
    var = jnp.mean(xc * xc, axis=-1, keepdims=True)
    s = xc * jax.lax.rsqrt(var + LN_EPS) * g_ref[...] + beta_ref[...]
    q = jnp.dot(s, wq_ref[...], preferred_element_type=jnp.float32) + bq_ref[...]
    k = jnp.dot(s, wk_ref[...], preferred_element_type=jnp.float32) + bk_ref[...]
    q_ref[0] = q
    k_ref[0] = k
    # Factored "diff" half of o_proj: diff @ w2_diff == (q @ wd) - (k @ wd).
    # Fold the o_proj bias into qd so stage 2 adds exactly two broadcasts.
    qd_ref[0] = jnp.dot(q, wd_ref[...],
                        preferred_element_type=jnp.float32) + b2_ref[...]
    kd_ref[0] = jnp.dot(k, wd_ref[...], preferred_element_type=jnp.float32)


def pair_kernel(q_ref, k_ref, qd_ref, kd_ref, wp_ref, o_ref):
    # q: (1, L, I)  k: (1, TI, I)  qd: (1, L, P)  kd: (1, TI, P)  wp: (I, P)
    # o: (1, TI, L*P)  — lane-dense slab; wrapper views it as (B, L, L, P).
    q = q_ref[0]                                        # (L, I)
    k = k_ref[0]                                        # (TI, I)
    TI, I = k.shape
    L = q.shape[0]
    prod = k[:, None, :] * q[None, :, :]                # (TI, L, I): k_i * q_j
    y = jnp.dot(prod.reshape(TI * L, I), wp_ref[...],
                preferred_element_type=jnp.float32).reshape(TI, L, -1)
    y = y + qd_ref[0][None, :, :] - kd_ref[0][:, None, :]
    o_ref[0] = y.reshape(TI, -1)                        # (TI, L*P) lane-dense


def _pick_block_i(L, inner, P, budget_bytes=8 << 20):
    """Largest row-tile TI (divisor of L; TI == L or TI % 8 == 0) whose stage-2
    working set (double-buffered (TI, L*P) out tile + (TI, L, I) prod +
    (TI, L, P) y, all f32) fits a conservative budget that works within the
    scoped-VMEM defaults of v5e/v6e (128 MiB phys) and v7x (64 MiB phys)."""
    cands = [ti for ti in range(1, L + 1)
             if L % ti == 0 and (ti == L or ti % 8 == 0)]

    def work_bytes(ti):
        return 4 * ti * L * (3 * P + inner)

    fitting = [ti for ti in cands if work_bytes(ti) <= budget_bytes]
    return max(fitting) if fitting else min(cands)


def sequence_to_pair(x, gamma, beta, w1, b1, w2, b2, *, block_i=None):
    B, L, D = x.shape
    twoI = w1.shape[1]
    inner = twoI // 2
    P = w2.shape[1]

    # Host-side weight pre-split: loaded once, no in-kernel slicing along 2I.
    wq, wk = w1[:, :inner], w1[:, inner:]
    bq, bk = b1[:inner].reshape(1, inner), b1[inner:].reshape(1, inner)
    w2p, w2d = w2[:inner, :], w2[inner:, :]

    # ---- stage 1: layernorm + proj (+ factored diff matmuls), per batch ----
    q, k, qd, kd = pl.pallas_call(
        ln_proj_kernel,
        out_shape=(
            jax.ShapeDtypeStruct((B, L, inner), jnp.float32),
            jax.ShapeDtypeStruct((B, L, inner), jnp.float32),
            jax.ShapeDtypeStruct((B, L, P), jnp.float32),
            jax.ShapeDtypeStruct((B, L, P), jnp.float32),
        ),
        grid=(B,),
        in_specs=[
            pl.BlockSpec((1, L, D), lambda b: (b, 0, 0)),
            pl.BlockSpec((1, D), lambda b: (0, 0)),
            pl.BlockSpec((1, D), lambda b: (0, 0)),
            pl.BlockSpec((D, inner), lambda b: (0, 0)),
            pl.BlockSpec((D, inner), lambda b: (0, 0)),
            pl.BlockSpec((1, inner), lambda b: (0, 0)),
            pl.BlockSpec((1, inner), lambda b: (0, 0)),
            pl.BlockSpec((inner, P), lambda b: (0, 0)),
            pl.BlockSpec((1, P), lambda b: (0, 0)),
        ],
        out_specs=(
            pl.BlockSpec((1, L, inner), lambda b: (b, 0, 0)),
            pl.BlockSpec((1, L, inner), lambda b: (b, 0, 0)),
            pl.BlockSpec((1, L, P), lambda b: (b, 0, 0)),
            pl.BlockSpec((1, L, P), lambda b: (b, 0, 0)),
        ),
        compiler_params=pltpu.CompilerParams(dimension_semantics=("parallel",)),
    )(x, gamma.reshape(1, D), beta.reshape(1, D), wq, wk, bq, bk, w2d,
      b2.reshape(1, P))

    # ---- stage 2: pairwise product half of o_proj, lane-dense output -------
    TI = block_i if block_i is not None else _pick_block_i(L, inner, P)
    assert L % TI == 0, (L, TI)
    pair_flat = pl.pallas_call(
        pair_kernel,
        out_shape=jax.ShapeDtypeStruct((B, L, L * P), jnp.float32),
        grid=(B, L // TI),
        in_specs=[
            pl.BlockSpec((1, L, inner), lambda b, i: (b, 0, 0)),   # q: all rows
            pl.BlockSpec((1, TI, inner), lambda b, i: (b, i, 0)),  # k: row tile
            pl.BlockSpec((1, L, P), lambda b, i: (b, 0, 0)),       # qd: all rows
            pl.BlockSpec((1, TI, P), lambda b, i: (b, i, 0)),      # kd: row tile
            pl.BlockSpec((inner, P), lambda b, i: (0, 0)),         # w2_prod
        ],
        out_specs=pl.BlockSpec((1, TI, L * P), lambda b, i: (b, i, 0)),
        compiler_params=pltpu.CompilerParams(
            dimension_semantics=("parallel", "parallel")),
    )(q, k, qd, kd, w2p)

    # Free row-major view: out[b, i, j, p] with i = k-row, j = q-row.
    return pair_flat.reshape(B, L, L, P)


def reference(x, gamma, beta, w1, b1, w2, b2):
    mu = jnp.mean(x, -1, keepdims=True)
    var = jnp.mean((x - mu) ** 2, -1, keepdims=True)
    s = (x - mu) / jnp.sqrt(var + LN_EPS) * gamma + beta
    s = s @ w1 + b1
    q, k = jnp.split(s, 2, axis=-1)
    prod = q[:, None, :, :] * k[:, :, None, :]
    diff = q[:, None, :, :] - k[:, :, None, :]
    xx = jnp.concatenate([prod, diff], axis=-1)
    return xx @ w2 + b2


if __name__ == "__main__":
    # sequence_state_dim=32, inner_dim=16, pairwise_state_dim=8
    B, L, D, INNER, P = 2, 8, 32, 16, 8

    key = jax.random.PRNGKey(0)
    kx, kw1, kw2, kg = jax.random.split(key, 4)

    x = jax.random.normal(kx, (B, L, D), dtype=jnp.float32)

    # LayerNorm params (default init: gamma=1, beta=0)
    gamma = jnp.ones((D,), jnp.float32)
    beta = jnp.zeros((D,), jnp.float32)
    # proj: Linear(D -> 2*inner), bias zeroed in __init__
    w1 = 0.1 * jax.random.normal(kw1, (D, 2 * INNER), dtype=jnp.float32)
    b1 = jnp.zeros((2 * INNER,), jnp.float32)
    # o_proj: Linear(2*inner -> P), bias zeroed in __init__
    w2 = 0.1 * jax.random.normal(kw2, (2 * INNER, P), dtype=jnp.float32)
    b2 = jnp.zeros((P,), jnp.float32)

    out = sequence_to_pair(x, gamma, beta, w1, b1, w2, b2)
    out = jax.block_until_ready(out)

    ref = reference(x, gamma, beta, w1, b1, w2, b2)
    np.testing.assert_allclose(np.asarray(out), np.asarray(ref),
                               rtol=1e-4, atol=1e-4)
    assert out.shape == (B, L, L, P)
    print("KERNEL_OK")
</pallas_src>

<mosaic_0001>
module attributes {stable_mosaic.version = 11 : i64} {
  func.func @ln_proj_kernel(%arg0: i32, %arg1: memref<1x8x32xf32, #tpu.memory_space<vmem>>, %arg2: memref<1x32xf32, #tpu.memory_space<vmem>>, %arg3: memref<1x32xf32, #tpu.memory_space<vmem>>, %arg4: memref<32x16xf32, #tpu.memory_space<vmem>>, %arg5: memref<32x16xf32, #tpu.memory_space<vmem>>, %arg6: memref<1x16xf32, #tpu.memory_space<vmem>>, %arg7: memref<1x16xf32, #tpu.memory_space<vmem>>, %arg8: memref<16x8xf32, #tpu.memory_space<vmem>>, %arg9: memref<1x8xf32, #tpu.memory_space<vmem>>, %arg10: memref<1x8x16xf32, #tpu.memory_space<vmem>>, %arg11: memref<1x8x16xf32, #tpu.memory_space<vmem>>, %arg12: memref<1x8x8xf32, #tpu.memory_space<vmem>>, %arg13: memref<1x8x8xf32, #tpu.memory_space<vmem>>) attributes {dimension_semantics = [#tpu.dimension_semantics<parallel>], iteration_bounds = array<i64: 2>, scalar_prefetch = 0 : i64, scratch_operands = 0 : i64, tpu.core_type = #tpu.core_type<tc>, window_params = [{transform_indices = @transform_0, window_bounds = array<i64: 1, 8, 32>}, {pipeline_mode = #tpu.pipeline_mode<synchronous>, transform_indices = @transform_1, window_bounds = array<i64: 1, 32>}, {pipeline_mode = #tpu.pipeline_mode<synchronous>, transform_indices = @transform_2, window_bounds = array<i64: 1, 32>}, {pipeline_mode = #tpu.pipeline_mode<synchronous>, transform_indices = @transform_3, window_bounds = array<i64: 32, 16>}, {pipeline_mode = #tpu.pipeline_mode<synchronous>, transform_indices = @transform_4, window_bounds = array<i64: 32, 16>}, {pipeline_mode = #tpu.pipeline_mode<synchronous>, transform_indices = @transform_5, window_bounds = array<i64: 1, 16>}, {pipeline_mode = #tpu.pipeline_mode<synchronous>, transform_indices = @transform_6, window_bounds = array<i64: 1, 16>}, {pipeline_mode = #tpu.pipeline_mode<synchronous>, transform_indices = @transform_7, window_bounds = array<i64: 16, 8>}, {pipeline_mode = #tpu.pipeline_mode<synchronous>, transform_indices = @transform_8, window_bounds = array<i64: 1, 8>}, {transform_indices = @transform_9, window_bounds = array<i64: 1, 8, 16>}, {transform_indices = @transform_10, window_bounds = array<i64: 1, 8, 16>}, {transform_indices = @transform_11, window_bounds = array<i64: 1, 8, 8>}, {transform_indices = @transform_12, window_bounds = array<i64: 1, 8, 8>}]} {
    %c0 = arith.constant 0 : index
    %c0_0 = arith.constant 0 : index
    %c0_1 = arith.constant 0 : index
    %0 = vector.load %arg1[%c0, %c0_0, %c0_1] : memref<1x8x32xf32, #tpu.memory_space<vmem>>, vector<1x8x32xf32>
    %1 = vector.shape_cast %0 : vector<1x8x32xf32> to vector<8x32xf32>
    %cst = arith.constant dense<0.000000e+00> : vector<8xf32>
    %2 = vector.multi_reduction <add>, %1, %cst [1] : vector<8x32xf32> to vector<8xf32>
    %3 = vector.shape_cast %2 : vector<8xf32> to vector<8x1xf32>
    %cst_2 = arith.constant 3.200000e+01 : f32
    %4 = vector.broadcast %cst_2 : f32 to vector<8x1xf32>
    %5 = arith.divf %3, %4 : vector<8x1xf32>
    %6 = vector.broadcast %5 : vector<8x1xf32> to vector<8x32xf32>
    %7 = arith.subf %1, %6 : vector<8x32xf32>
    %8 = arith.mulf %7, %7 : vector<8x32xf32>
    %cst_3 = arith.constant dense<0.000000e+00> : vector<8xf32>
    %9 = vector.multi_reduction <add>, %8, %cst_3 [1] : vector<8x32xf32> to vector<8xf32>
    %10 = vector.shape_cast %9 : vector<8xf32> to vector<8x1xf32>
    %cst_4 = arith.constant 3.200000e+01 : f32
    %11 = vector.broadcast %cst_4 : f32 to vector<8x1xf32>
    %12 = arith.divf %10, %11 : vector<8x1xf32>
    %cst_5 = arith.constant 9.99999974E-6 : f32
    %13 = vector.broadcast %cst_5 : f32 to vector<8x1xf32>
    %14 = arith.addf %12, %13 : vector<8x1xf32>
    %15 = math.rsqrt %14 : vector<8x1xf32>
    %16 = vector.broadcast %15 : vector<8x1xf32> to vector<8x32xf32>
    %17 = arith.mulf %7, %16 : vector<8x32xf32>
    %c0_6 = arith.constant 0 : index
    %c0_7 = arith.constant 0 : index
    %18 = vector.load %arg2[%c0_6, %c0_7] : memref<1x32xf32, #tpu.memory_space<vmem>>, vector<1x32xf32>
    %19 = vector.broadcast %18 : vector<1x32xf32> to vector<8x32xf32>
    %20 = arith.mulf %17, %19 : vector<8x32xf32>
    %c0_8 = arith.constant 0 : index
    %c0_9 = arith.constant 0 : index
    %21 = vector.load %arg3[%c0_8, %c0_9] : memref<1x32xf32, #tpu.memory_space<vmem>>, vector<1x32xf32>
    %22 = vector.broadcast %21 : vector<1x32xf32> to vector<8x32xf32>
    %23 = arith.addf %20, %22 : vector<8x32xf32>
    %c0_10 = arith.constant 0 : index
    %c0_11 = arith.constant 0 : index
    %24 = vector.load %arg4[%c0_10, %c0_11] : memref<32x16xf32, #tpu.memory_space<vmem>>, vector<32x16xf32>
    %cst_12 = arith.constant dense<0.000000e+00> : vector<8x16xf32>
    %25 = tpu.matmul %23, %24, %cst_12 {dimension_numbers = #tpu.dot_dimension_numbers<[1], [0], [0], [1], [0, 0, 1, 1], [], []>} : vector<8x32xf32>, vector<32x16xf32>, vector<8x16xf32> -> vector<8x16xf32>
    %c0_13 = arith.constant 0 : index
    %c0_14 = arith.constant 0 : index
    %26 = vector.load %arg6[%c0_13, %c0_14] : memref<1x16xf32, #tpu.memory_space<vmem>>, vector<1x16xf32>
    %27 = vector.broadcast %26 : vector<1x16xf32> to vector<8x16xf32>
    %28 = arith.addf %25, %27 : vector<8x16xf32>
    %c0_15 = arith.constant 0 : index
    %c0_16 = arith.constant 0 : index
    %29 = vector.load %arg5[%c0_15, %c0_16] : memref<32x16xf32, #tpu.memory_space<vmem>>, vector<32x16xf32>
    %cst_17 = arith.constant dense<0.000000e+00> : vector<8x16xf32>
    %30 = tpu.matmul %23, %29, %cst_17 {dimension_numbers = #tpu.dot_dimension_numbers<[1], [0], [0], [1], [0, 0, 1, 1], [], []>} : vector<8x32xf32>, vector<32x16xf32>, vector<8x16xf32> -> vector<8x16xf32>
    %c0_18 = arith.constant 0 : index
    %c0_19 = arith.constant 0 : index
    %31 = vector.load %arg7[%c0_18, %c0_19] : memref<1x16xf32, #tpu.memory_space<vmem>>, vector<1x16xf32>
    %32 = vector.broadcast %31 : vector<1x16xf32> to vector<8x16xf32>
    %33 = arith.addf %30, %32 : vector<8x16xf32>
    %c0_20 = arith.constant 0 : index
    %c0_21 = arith.constant 0 : index
    %c0_22 = arith.constant 0 : index
    %34 = vector.load %arg10[%c0_20, %c0_21, %c0_22] : memref<1x8x16xf32, #tpu.memory_space<vmem>>, vector<1x8x16xf32>
    %35 = vector.shape_cast %34 : vector<1x8x16xf32> to vector<8x16xf32>
    %36 = vector.shape_cast %28 : vector<8x16xf32> to vector<1x8x16xf32>
    tpu.vector_store %arg10[%c0_20, %c0_21, %c0_22], %36 {strides = array<i32>} : memref<1x8x16xf32, #tpu.memory_space<vmem>>, vector<1x8x16xf32>,
    %c0_23 = arith.constant 0 : index
    %c0_24 = arith.constant 0 : index
    %c0_25 = arith.constant 0 : index
    %37 = vector.load %arg11[%c0_23, %c0_24, %c0_25] : memref<1x8x16xf32, #tpu.memory_space<vmem>>, vector<1x8x16xf32>
    %38 = vector.shape_cast %37 : vector<1x8x16xf32> to vector<8x16xf32>
    %39 = vector.shape_cast %33 : vector<8x16xf32> to vector<1x8x16xf32>
    tpu.vector_store %arg11[%c0_23, %c0_24, %c0_25], %39 {strides = array<i32>} : memref<1x8x16xf32, #tpu.memory_space<vmem>>, vector<1x8x16xf32>,
    %c0_26 = arith.constant 0 : index
    %c0_27 = arith.constant 0 : index
    %40 = vector.load %arg8[%c0_26, %c0_27] : memref<16x8xf32, #tpu.memory_space<vmem>>, vector<16x8xf32>
    %cst_28 = arith.constant dense<0.000000e+00> : vector<8x8xf32>
    %41 = tpu.matmul %28, %40, %cst_28 {dimension_numbers = #tpu.dot_dimension_numbers<[1], [0], [0], [1], [0, 0, 1, 1], [], []>} : vector<8x16xf32>, vector<16x8xf32>, vector<8x8xf32> -> vector<8x8xf32>
    %c0_29 = arith.constant 0 : index
    %c0_30 = arith.constant 0 : index
    %42 = vector.load %arg9[%c0_29, %c0_30] : memref<1x8xf32, #tpu.memory_space<vmem>>, vector<1x8xf32>
    %43 = vector.broadcast %42 : vector<1x8xf32> to vector<8x8xf32>
    %44 = arith.addf %41, %43 : vector<8x8xf32>
    %c0_31 = arith.constant 0 : index
    %c0_32 = arith.constant 0 : index
    %c0_33 = arith.constant 0 : index
    %45 = vector.load %arg12[%c0_31, %c0_32, %c0_33] : memref<1x8x8xf32, #tpu.memory_space<vmem>>, vector<1x8x8xf32>
    %46 = vector.shape_cast %45 : vector<1x8x8xf32> to vector<8x8xf32>
    %47 = vector.shape_cast %44 : vector<8x8xf32> to vector<1x8x8xf32>
    tpu.vector_store %arg12[%c0_31, %c0_32, %c0_33], %47 {strides = array<i32>} : memref<1x8x8xf32, #tpu.memory_space<vmem>>, vector<1x8x8xf32>,
    %c0_34 = arith.constant 0 : index
    %c0_35 = arith.constant 0 : index
    %48 = vector.load %arg8[%c0_34, %c0_35] : memref<16x8xf32, #tpu.memory_space<vmem>>, vector<16x8xf32>
    %cst_36 = arith.constant dense<0.000000e+00> : vector<8x8xf32>
    %49 = tpu.matmul %33, %48, %cst_36 {dimension_numbers = #tpu.dot_dimension_numbers<[1], [0], [0], [1], [0, 0, 1, 1], [], []>} : vector<8x16xf32>, vector<16x8xf32>, vector<8x8xf32> -> vector<8x8xf32>
    %c0_37 = arith.constant 0 : index
    %c0_38 = arith.constant 0 : index
    %c0_39 = arith.constant 0 : index
    %50 = vector.load %arg13[%c0_37, %c0_38, %c0_39] : memref<1x8x8xf32, #tpu.memory_space<vmem>>, vector<1x8x8xf32>
    %51 = vector.shape_cast %50 : vector<1x8x8xf32> to vector<8x8xf32>
    %52 = vector.shape_cast %49 : vector<8x8xf32> to vector<1x8x8xf32>
    tpu.vector_store %arg13[%c0_37, %c0_38, %c0_39], %52 {strides = array<i32>} : memref<1x8x8xf32, #tpu.memory_space<vmem>>, vector<1x8x8xf32>,
    return
  }
  func.func @transform_0(%arg0: i32) -> (i32, i32, i32) {
    %c0_i32 = arith.constant 0 : i32
    %c0_i32_0 = arith.constant 0 : i32
    %c0_i32_1 = arith.constant 0 : i32
    return %arg0, %c0_i32, %c0_i32_0 : i32, i32, i32
  }
  func.func @transform_1(%arg0: i32) -> (i32, i32) {
    %c0_i32 = arith.constant 0 : i32
    %c0_i32_0 = arith.constant 0 : i32
    %c0_i32_1 = arith.constant 0 : i32
    return %c0_i32, %c0_i32_0 : i32, i32
  }
  func.func @transform_2(%arg0: i32) -> (i32, i32) {
    %c0_i32 = arith.constant 0 : i32
    %c0_i32_0 = arith.constant 0 : i32
    %c0_i32_1 = arith.constant 0 : i32
    return %c0_i32, %c0_i32_0 : i32, i32
  }
  func.func @transform_3(%arg0: i32) -> (i32, i32) {
    %c0_i32 = arith.constant 0 : i32
    %c0_i32_0 = arith.constant 0 : i32
    %c0_i32_1 = arith.constant 0 : i32
    return %c0_i32, %c0_i32_0 : i32, i32
  }
  func.func @transform_4(%arg0: i32) -> (i32, i32) {
    %c0_i32 = arith.constant 0 : i32
    %c0_i32_0 = arith.constant 0 : i32
    %c0_i32_1 = arith.constant 0 : i32
    return %c0_i32, %c0_i32_0 : i32, i32
  }
  func.func @transform_5(%arg0: i32) -> (i32, i32) {
    %c0_i32 = arith.constant 0 : i32
    %c0_i32_0 = arith.constant 0 : i32
    %c0_i32_1 = arith.constant 0 : i32
    return %c0_i32, %c0_i32_0 : i32, i32
  }
  func.func @transform_6(%arg0: i32) -> (i32, i32) {
    %c0_i32 = arith.constant 0 : i32
    %c0_i32_0 = arith.constant 0 : i32
    %c0_i32_1 = arith.constant 0 : i32
    return %c0_i32, %c0_i32_0 : i32, i32
  }
  func.func @transform_7(%arg0: i32) -> (i32, i32) {
    %c0_i32 = arith.constant 0 : i32
    %c0_i32_0 = arith.constant 0 : i32
    %c0_i32_1 = arith.constant 0 : i32
    return %c0_i32, %c0_i32_0 : i32, i32
  }
  func.func @transform_8(%arg0: i32) -> (i32, i32) {
    %c0_i32 = arith.constant 0 : i32
    %c0_i32_0 = arith.constant 0 : i32
    %c0_i32_1 = arith.constant 0 : i32
    return %c0_i32, %c0_i32_0 : i32, i32
  }
  func.func @transform_9(%arg0: i32) -> (i32, i32, i32) {
    %c0_i32 = arith.constant 0 : i32
    %c0_i32_0 = arith.constant 0 : i32
    %c0_i32_1 = arith.constant 0 : i32
    return %arg0, %c0_i32, %c0_i32_0 : i32, i32, i32
  }
  func.func @transform_10(%arg0: i32) -> (i32, i32, i32) {
    %c0_i32 = arith.constant 0 : i32
    %c0_i32_0 = arith.constant 0 : i32
    %c0_i32_1 = arith.constant 0 : i32
    return %arg0, %c0_i32, %c0_i32_0 : i32, i32, i32
  }
  func.func @transform_11(%arg0: i32) -> (i32, i32, i32) {
    %c0_i32 = arith.constant 0 : i32
    %c0_i32_0 = arith.constant 0 : i32
    %c0_i32_1 = arith.constant 0 : i32
    return %arg0, %c0_i32, %c0_i32_0 : i32, i32, i32
  }
  func.func @transform_12(%arg0: i32) -> (i32, i32, i32) {
    %c0_i32 = arith.constant 0 : i32
    %c0_i32_0 = arith.constant 0 : i32
    %c0_i32_1 = arith.constant 0 : i32
    return %arg0, %c0_i32, %c0_i32_0 : i32, i32, i32
  }
}

</mosaic_0001>

<llo_original>
// kernel: tpu_custom_call.1
$region0: #{tpu_custom_call.1}
  #allocation0 [shape = 'u32[]', space=smem, size = 0x4, offset = 0x4, fixed_abs, tag = 'smem constant byte address 0x4 - core index']
  #allocation1 [shape = 'u32[144,128]{1,0:T(1,128)}', space=vmem, size = 0x12000, scoped, tag = 'internal scratch']
  %s0 = inlined_call_operand.vmem [shape: f32[2,8,32], index: 0, kind: input, shape index: {}]
  %s1 = inlined_call_operand.vmem [shape: f32[1,32], index: 1, kind: input, shape index: {}]
  %s2 = inlined_call_operand.vmem [shape: f32[1,32], index: 2, kind: input, shape index: {}]
  %s3 = inlined_call_operand.vmem [shape: f32[32,16], index: 3, kind: input, shape index: {}]
  %s4 = inlined_call_operand.vmem [shape: f32[32,16], index: 4, kind: input, shape index: {}]
  %s5 = inlined_call_operand.vmem [shape: f32[1,16], index: 5, kind: input, shape index: {}]
  %s6 = inlined_call_operand.vmem [shape: f32[1,16], index: 6, kind: input, shape index: {}]
  %s7 = inlined_call_operand.vmem [shape: f32[16,8], index: 7, kind: input, shape index: {}]
  %s8 = inlined_call_operand.vmem [shape: f32[1,8], index: 8, kind: input, shape index: {}]
  %s9 = inlined_call_operand.hbm [shape: f32[2,8,16], index: 9, kind: output, shape index: {0}]
  %s10 = inlined_call_operand.hbm [shape: f32[2,8,16], index: 10, kind: output, shape index: {1}]
  %s11 = inlined_call_operand.hbm [shape: f32[2,8,8], index: 11, kind: output, shape index: {2}]
  %s12 = inlined_call_operand.hbm [shape: f32[2,8,8], index: 12, kind: output, shape index: {3}]
  %13 = xla_tuple %s9, %s10, %s11, %s12
  %s14 = sld [smem:[#allocation0]]
  $region93: #{tpu_custom_call.1} parent=0
    _
  %s16 = ssub.s32 1, %s14
  %s17 = scalar_select 0, %s16, %s14
  $region1: #{tpu_custom_call.1} parent=0
    #allocation2 [shape = 'u8[8192]{0}', space=vmem, size = 0x2000, scoped, tag = 'output window, operand 0']
    #allocation3 [shape = 's32[2]{0}', space=sflag, size = 0x8, scoped, tag = 'scoped memory for tpu_custom_call.1']
    #allocation4 [shape = 'u8[8192]{0}', space=vmem, size = 0x2000, scoped, tag = 'output window, operand 1']
    #allocation5 [shape = 's32[2]{0}', space=sflag, size = 0x8, scoped, tag = 'scoped memory for tpu_custom_call.1']
    #allocation6 [shape = 'u8[8192]{0}', space=vmem, size = 0x2000, scoped, tag = 'output window, operand 2']
    #allocation7 [shape = 'u8[8192]{0}', space=vmem, size = 0x2000, scoped, tag = 'output window, operand 3']
    #allocation8 [shape = 's32[2]{0}', space=sflag, size = 0x8, scoped, tag = 'scoped memory for tpu_custom_call.1']
    %18 = vsyncpa [#allocation3], 0
    %s19 = scalar_lea.sflag [#allocation3], 1
    %20 = vsyncpa %s19, 0
    %21 = vsyncpa [#allocation5], 0
    %s22 = scalar_lea.sflag [#allocation5], 1
    %23 = vsyncpa %s22, 0
    %24 = vsyncpa [#allocation8], 0
    %s25 = scalar_lea.sflag [#allocation8], 1
    %26 = vsyncpa %s25, 0
    loop: start=0, step=1, limit=4
    $region2: #{tpu_custom_call.1} parent=1 // loop_pre_header
      _
    $region3: #{tpu_custom_call.1} parent=1 // loop_header
      %s28 = sphi 0, %s32
      %p29 = scmp.ge.s32.totalorder %s28, 4
      %s38 = sphi 0, %s40
      %s41 = sphi 0, %s38
      %s42 = sphi 0, %s41
      %s58 = sphi 0, %s42
      %s62 = sphi 0, %s62
      %s64 = sphi 0, %s62
      %s65 = sphi 0, %s64
      %s79 = sphi 0, %s65
      %s83 = sphi 0, %s83
      %s85 = sphi 0, %s83
      %s86 = sphi 0, %s85
      %s100 = sphi 0, %s86
      %s104 = sphi 0, %s104
      %s106 = sphi 0, %s104
      %s107 = sphi 0, %s106
      %s121 = sphi 0, %s107
      %s125 = sphi 0, %s125
      %s127 = sphi 0, %s125
      %s128 = sphi 0, %s127
      %s142 = sphi 0, %s128
      %s146 = sphi 0, %s146
      %s148 = sphi 0, %s146
      %s149 = sphi 0, %s148
      %s163 = sphi 0, %s149
      %s167 = sphi 0, %s167
      %s169 = sphi 0, %s167
      %s170 = sphi 0, %s169
      %s184 = sphi 0, %s170
      %s188 = sphi 0, %s188
      %s190 = sphi 0, %s188
      %s191 = sphi 0, %s190
      %s205 = sphi 0, %s191
      %s209 = sphi 0, %s209
      %s211 = sphi 0, %s209
      %s212 = sphi 0, %s211
      %s226 = sphi 0, %s212
      %s232 = sphi 0, %s234
      %s235 = sphi 0, %s232
      %s236 = sphi 0, %s235
      %s252 = sphi 0, %s236
      %s258 = sphi 0, %s260
      %s261 = sphi 0, %s258
      %s262 = sphi 0, %s261
      %s278 = sphi 0, %s262
      %s284 = sphi 0, %s286
      %s287 = sphi 0, %s284
      %s288 = sphi 0, %s287
      %s304 = sphi 0, %s288
      %s310 = sphi 0, %s312
      %s313 = sphi 0, %s310
      %s314 = sphi 0, %s313
      %s330 = sphi 0, %s314
    $region4: #{tpu_custom_call.1} parent=1 // loop_header_branch
      %31 = sbr.rel (%p29) target = $region8
    $region5: #{tpu_custom_call.1} parent=1 // loop_body
      %s33 = ssub.s32 %s28, 1
      %s34 = ssub.s32 %s28, 2
      %s35 = sadd.s32 %s28, 1
      %s36 = ssub.s32 %s28, %s35
      %p37 = scmp.eq.s32.totalorder %s36, 0
      %s39 = sadd.s32 %s38, 1
      %s40 = scalar_select %p37, %s38, %s39
      %p43 = pneg %p37
      %p44 = scmp.eq.s32.totalorder %s28, 1
      %p45 = por %p43, %p44
      %p46 = scmp.ne.s32.totalorder %s38, %s41
      %p47 = scmp.eq.s32.totalorder %s28, 0
      %p48 = por %p46, %p47
      %p49 = scmp.ne.s32.totalorder %s38, %s41
      %p50 = scmp.eq.s32.totalorder %s33, 1
      %p51 = por %p49, %p50
      %p52 = scmp.ne.s32.totalorder %s41, %s42
      %p53 = scmp.eq.s32.totalorder %s33, 0
      %p54 = por %p52, %p53
      %p55 = scmp.ne.s32.totalorder %s41, %s42
      %p56 = scmp.eq.s32.totalorder %s34, 1
      %p57 = por %p55, %p56
      %p59 = scmp.ne.s32.totalorder %s42, %s58
      %p60 = scmp.eq.s32.totalorder %s34, 0
      %p61 = por %p59, %p60
      %s63 = sadd.s32 %s62, 1
      %p66 = scmp.eq.s32.totalorder %s28, 1
      %p67 = scmp.ne.s32.totalorder %s62, %s64
      %p68 = scmp.eq.s32.totalorder %s28, 0
      %p69 = por %p67, %p68
      %p70 = scmp.ne.s32.totalorder %s62, %s64
      %p71 = scmp.eq.s32.totalorder %s33, 1
      %p72 = por %p70, %p71
      %p73 = scmp.ne.s32.totalorder %s64, %s65
      %p74 = scmp.eq.s32.totalorder %s33, 0
      %p75 = por %p73, %p74
      %p76 = scmp.ne.s32.totalorder %s64, %s65
      %p77 = scmp.eq.s32.totalorder %s34, 1
      %p78 = por %p76, %p77
      %p80 = scmp.ne.s32.totalorder %s65, %s79
      %p81 = scmp.eq.s32.totalorder %s34, 0
      %p82 = por %p80, %p81
      %s84 = sadd.s32 %s83, 1
      %p87 = scmp.eq.s32.totalorder %s28, 1
      %p88 = scmp.ne.s32.totalorder %s83, %s85
      %p89 = scmp.eq.s32.totalorder %s28, 0
      %p90 = por %p88, %p89
      %p91 = scmp.ne.s32.totalorder %s83, %s85
      %p92 = scmp.eq.s32.totalorder %s33, 1
      %p93 = por %p91, %p92
      %p94 = scmp.ne.s32.totalorder %s85, %s86
      %p95 = scmp.eq.s32.totalorder %s33, 0
      %p96 = por %p94, %p95
      %p97 = scmp.ne.s32.totalorder %s85, %s86
      %p98 = scmp.eq.s32.totalorder %s34, 1
      %p99 = por %p97, %p98
      %p101 = scmp.ne.s32.totalorder %s86, %s100
      %p102 = scmp.eq.s32.totalorder %s34, 0
      %p103 = por %p101, %p102
      %s105 = sadd.s32 %s104, 1
      %p108 = scmp.eq.s32.totalorder %s28, 1
      %p109 = scmp.ne.s32.totalorder %s104, %s106
      %p110 = scmp.eq.s32.totalorder %s28, 0
      %p111 = por %p109, %p110
      %p112 = scmp.ne.s32.totalorder %s104, %s106
      %p113 = scmp.eq.s32.totalorder %s33, 1
      %p114 = por %p112, %p113
      %p115 = scmp.ne.s32.totalorder %s106, %s107
      %p116 = scmp.eq.s32.totalorder %s33, 0
      %p117 = por %p115, %p116
      %p118 = scmp.ne.s32.totalorder %s106, %s107
      %p119 = scmp.eq.s32.totalorder %s34, 1
      %p120 = por %p118, %p119
      %p122 = scmp.ne.s32.totalorder %s107, %s121
      %p123 = scmp.eq.s32.totalorder %s34, 0
      %p124 = por %p122, %p123
      %s126 = sadd.s32 %s125, 1
      %p129 = scmp.eq.s32.totalorder %s28, 1
      %p130 = scmp.ne.s32.totalorder %s125, %s127
      %p131 = scmp.eq.s32.totalorder %s28, 0
      %p132 = por %p130, %p131
      %p133 = scmp.ne.s32.totalorder %s125, %s127
      %p134 = scmp.eq.s32.totalorder %s33, 1
      %p135 = por %p133, %p134
      %p136 = scmp.ne.s32.totalorder %s127, %s128
      %p137 = scmp.eq.s32.totalorder %s33, 0
      %p138 = por %p136, %p137
      %p139 = scmp.ne.s32.totalorder %s127, %s128
      %p140 = scmp.eq.s32.totalorder %s34, 1
      %p141 = por %p139, %p140
      %p143 = scmp.ne.s32.totalorder %s128, %s142
      %p144 = scmp.eq.s32.totalorder %s34, 0
      %p145 = por %p143, %p144
      %s147 = sadd.s32 %s146, 1
      %p150 = scmp.eq.s32.totalorder %s28, 1
      %p151 = scmp.ne.s32.totalorder %s146, %s148
      %p152 = scmp.eq.s32.totalorder %s28, 0
      %p153 = por %p151, %p152
      %p154 = scmp.ne.s32.totalorder %s146, %s148
      %p155 = scmp.eq.s32.totalorder %s33, 1
      %p156 = por %p154, %p155
      %p157 = scmp.ne.s32.totalorder %s148, %s149
      %p158 = scmp.eq.s32.totalorder %s33, 0
      %p159 = por %p157, %p158
      %p160 = scmp.ne.s32.totalorder %s148, %s149
      %p161 = scmp.eq.s32.totalorder %s34, 1
      %p162 = por %p160, %p161
      %p164 = scmp.ne.s32.totalorder %s149, %s163
      %p165 = scmp.eq.s32.totalorder %s34, 0
      %p166 = por %p164, %p165
      %s168 = sadd.s32 %s167, 1
      %p171 = scmp.eq.s32.totalorder %s28, 1
      %p172 = scmp.ne.s32.totalorder %s167, %s169
      %p173 = scmp.eq.s32.totalorder %s28, 0
      %p174 = por %p172, %p173
      %p175 = scmp.ne.s32.totalorder %s167, %s169
      %p176 = scmp.eq.s32.totalorder %s33, 1
      %p177 = por %p175, %p176
      %p178 = scmp.ne.s32.totalorder %s169, %s170
      %p179 = scmp.eq.s32.totalorder %s33, 0
      %p180 = por %p178, %p179
      %p181 = scmp.ne.s32.totalorder %s169, %s170
      %p182 = scmp.eq.s32.totalorder %s34, 1
      %p183 = por %p181, %p182
      %p185 = scmp.ne.s32.totalorder %s170, %s184
      %p186 = scmp.eq.s32.totalorder %s34, 0
      %p187 = por %p185, %p186
      %s189 = sadd.s32 %s188, 1
      %p192 = scmp.eq.s32.totalorder %s28, 1
      %p193 = scmp.ne.s32.totalorder %s188, %s190
      %p194 = scmp.eq.s32.totalorder %s28, 0
      %p195 = por %p193, %p194
      %p196 = scmp.ne.s32.totalorder %s188, %s190
      %p197 = scmp.eq.s32.totalorder %s33, 1
      %p198 = por %p196, %p197
      %p199 = scmp.ne.s32.totalorder %s190, %s191
      %p200 = scmp.eq.s32.totalorder %s33, 0
      %p201 = por %p199, %p200
      %p202 = scmp.ne.s32.totalorder %s190, %s191
      %p203 = scmp.eq.s32.totalorder %s34, 1
      %p204 = por %p202, %p203
      %p206 = scmp.ne.s32.totalorder %s191, %s205
      %p207 = scmp.eq.s32.totalorder %s34, 0
      %p208 = por %p206, %p207
      %s210 = sadd.s32 %s209, 1
      %p213 = scmp.eq.s32.totalorder %s28, 1
      %p214 = scmp.ne.s32.totalorder %s209, %s211
      %p215 = scmp.eq.s32.totalorder %s28, 0
      %p216 = por %p214, %p215
      %p217 = scmp.ne.s32.totalorder %s209, %s211
      %p218 = scmp.eq.s32.totalorder %s33, 1
      %p219 = por %p217, %p218
      %p220 = scmp.ne.s32.totalorder %s211, %s212
      %p221 = scmp.eq.s32.totalorder %s33, 0
      %p222 = por %p220, %p221
      %p223 = scmp.ne.s32.totalorder %s211, %s212
      %p224 = scmp.eq.s32.totalorder %s34, 1
      %p225 = por %p223, %p224
      %p227 = scmp.ne.s32.totalorder %s212, %s226
      %p228 = scmp.eq.s32.totalorder %s34, 0
      %p229 = por %p227, %p228
      %s230 = ssub.s32 %s28, %s35
      %p231 = scmp.eq.s32.totalorder %s230, 0
      %s233 = sadd.s32 %s232, 1
      %s234 = scalar_select %p231, %s232, %s233
      %p237 = pneg %p231
      %p238 = scmp.eq.s32.totalorder %s28, 1
      %p239 = por %p237, %p238
      %p240 = scmp.ne.s32.totalorder %s232, %s235
      %p241 = scmp.eq.s32.totalorder %s28, 0
      %p242 = por %p240, %p241
      %p243 = scmp.ne.s32.totalorder %s232, %s235
      %p244 = scmp.eq.s32.totalorder %s33, 1
      %p245 = por %p243, %p244
      %p246 = scmp.ne.s32.totalorder %s235, %s236
      %p247 = scmp.eq.s32.totalorder %s33, 0
      %p248 = por %p246, %p247
      %p249 = scmp.ne.s32.totalorder %s235, %s236
      %p250 = scmp.eq.s32.totalorder %s34, 1
      %p251 = por %p249, %p250
      %p253 = scmp.ne.s32.totalorder %s236, %s252
      %p254 = scmp.eq.s32.totalorder %s34, 0
      %p255 = por %p253, %p254
      %s256 = ssub.s32 %s28, %s35
      %p257 = scmp.eq.s32.totalorder %s256, 0
      %s259 = sadd.s32 %s258, 1
      %s260 = scalar_select %p257, %s258, %s259
      %p263 = pneg %p257
      %p264 = scmp.eq.s32.totalorder %s28, 1
      %p265 = por %p263, %p264
      %p266 = scmp.ne.s32.totalorder %s258, %s261
      %p267 = scmp.eq.s32.totalorder %s28, 0
      %p268 = por %p266, %p267
      %p269 = scmp.ne.s32.totalorder %s258, %s261
      %p270 = scmp.eq.s32.totalorder %s33, 1
      %p271 = por %p269, %p270
      %p272 = scmp.ne.s32.totalorder %s261, %s262
      %p273 = scmp.eq.s32.totalorder %s33, 0
      %p274 = por %p272, %p273
      %p275 = scmp.ne.s32.totalorder %s261, %s262
      %p276 = scmp.eq.s32.totalorder %s34, 1
      %p277 = por %p275, %p276
      %p279 = scmp.ne.s32.totalorder %s262, %s278
      %p280 = scmp.eq.s32.totalorder %s34, 0
      %p281 = por %p279, %p280
      %s282 = ssub.s32 %s28, %s35
      %p283 = scmp.eq.s32.totalorder %s282, 0
      %s285 = sadd.s32 %s284, 1
      %s286 = scalar_select %p283, %s284, %s285
      %p289 = pneg %p283
      %p290 = scmp.eq.s32.totalorder %s28, 1
      %p291 = por %p289, %p290
      %p292 = scmp.ne.s32.totalorder %s284, %s287
      %p293 = scmp.eq.s32.totalorder %s28, 0
      %p294 = por %p292, %p293
      %p295 = scmp.ne.s32.totalorder %s284, %s287
      %p296 = scmp.eq.s32.totalorder %s33, 1
      %p297 = por %p295, %p296
      %p298 = scmp.ne.s32.totalorder %s287, %s288
      %p299 = scmp.eq.s32.totalorder %s33, 0
      %p300 = por %p298, %p299
      %p301 = scmp.ne.s32.totalorder %s287, %s288
      %p302 = scmp.eq.s32.totalorder %s34, 1
      %p303 = por %p301, %p302
      %p305 = scmp.ne.s32.totalorder %s288, %s304
      %p306 = scmp.eq.s32.totalorder %s34, 0
      %p307 = por %p305, %p306
      %s308 = ssub.s32 %s28, %s35
      %p309 = scmp.eq.s32.totalorder %s308, 0
      %s311 = sadd.s32 %s310, 1
      %s312 = scalar_select %p309, %s310, %s311
      %p315 = pneg %p309
      %p316 = scmp.eq.s32.totalorder %s28, 1
      %p317 = por %p315, %p316
      %p318 = scmp.ne.s32.totalorder %s310, %s313
      %p319 = scmp.eq.s32.totalorder %s28, 0
      %p320 = por %p318, %p319
      %p321 = scmp.ne.s32.totalorder %s310, %s313
      %p322 = scmp.eq.s32.totalorder %s33, 1
      %p323 = por %p321, %p322
      %p324 = scmp.ne.s32.totalorder %s313, %s314
      %p325 = scmp.eq.s32.totalorder %s33, 0
      %p326 = por %p324, %p325
      %p327 = scmp.ne.s32.totalorder %s313, %s314
      %p328 = scmp.eq.s32.totalorder %s34, 1
      %p329 = por %p327, %p328
      %p331 = scmp.ne.s32.totalorder %s314, %s330
      %p332 = scmp.eq.s32.totalorder %s34, 0
      %p333 = por %p331, %p332
      %p334 = scmp.le.s32.totalorder 1, %s28
      %p335 = scmp.lt.s32.totalorder %s28, 3
      %p336 = pnand %p334, %p335
      %p337 = pneg %p336
      // Predicated region
      $region9: #{tpu_custom_call.1} parent=5 // pred_check
        _
      $region10: #{tpu_custom_call.1} parent=5 // pred_check_branch
        %339 = sbr.rel (%p336) target = $region12
      $region11: #{tpu_custom_call.1} parent=5 // pred_region
        %s340 = ssub.s32 %s28, 1
        // Predicated region
        $region13: #{tpu_custom_call.1} parent=11 // pred_check
          %p341 = pneg %p75
        $region14: #{tpu_custom_call.1} parent=11 // pred_check_branch
          %343 = sbr.rel (%p341) target = $region16
        $region15: #{tpu_custom_call.1} parent=11 // pred_region
          _
        $region16: #{tpu_custom_call.1} parent=11 // pred_fallthru
          _
        // Predicated region
        $region17: #{tpu_custom_call.1} parent=11 // pred_check
          %p344 = pneg %p96
        $region18: #{tpu_custom_call.1} parent=11 // pred_check_branch
          %346 = sbr.rel (%p344) target = $region20
        $region19: #{tpu_custom_call.1} parent=11 // pred_region
          _
        $region20: #{tpu_custom_call.1} parent=11 // pred_fallthru
          _
        // Predicated region
        $region21: #{tpu_custom_call.1} parent=11 // pred_check
          %p347 = pneg %p117
        $region22: #{tpu_custom_call.1} parent=11 // pred_check_branch
          %349 = sbr.rel (%p347) target = $region24
        $region23: #{tpu_custom_call.1} parent=11 // pred_region
          _
        $region24: #{tpu_custom_call.1} parent=11 // pred_fallthru
          _
        // Predicated region
        $region25: #{tpu_custom_call.1} parent=11 // pred_check
          %p350 = pneg %p138
        $region26: #{tpu_custom_call.1} parent=11 // pred_check_branch
          %352 = sbr.rel (%p350) target = $region28
        $region27: #{tpu_custom_call.1} parent=11 // pred_region
          _
        $region28: #{tpu_custom_call.1} parent=11 // pred_fallthru
          _
        // Predicated region
        $region29: #{tpu_custom_call.1} parent=11 // pred_check
          %p353 = pneg %p159
        $region30: #{tpu_custom_call.1} parent=11 // pred_check_branch
          %355 = sbr.rel (%p353) target = $region32
        $region31: #{tpu_custom_call.1} parent=11 // pred_region
          _
        $region32: #{tpu_custom_call.1} parent=11 // pred_fallthru
          _
        // Predicated region
        $region33: #{tpu_custom_call.1} parent=11 // pred_check
          %p356 = pneg %p180
        $region34: #{tpu_custom_call.1} parent=11 // pred_check_branch
          %358 = sbr.rel (%p356) target = $region36
        $region35: #{tpu_custom_call.1} parent=11 // pred_region
          _
        $region36: #{tpu_custom_call.1} parent=11 // pred_fallthru
          _
        // Predicated region
        $region37: #{tpu_custom_call.1} parent=11 // pred_check
          %p359 = pneg %p201
        $region38: #{tpu_custom_call.1} parent=11 // pred_check_branch
          %361 = sbr.rel (%p359) target = $region40
        $region39: #{tpu_custom_call.1} parent=11 // pred_region
          _
        $region40: #{tpu_custom_call.1} parent=11 // pred_fallthru
          _
        // Predicated region
        $region41: #{tpu_custom_call.1} parent=11 // pred_check
          %p362 = pneg %p222
        $region42: #{tpu_custom_call.1} parent=11 // pred_check_branch
          %364 = sbr.rel (%p362) target = $region44
        $region43: #{tpu_custom_call.1} parent=11 // pred_region
          _
        $region44: #{tpu_custom_call.1} parent=11 // pred_fallthru
          _
      $region12: #{tpu_custom_call.1} parent=5 // pred_fallthru
        _
      %p365 = scmp.lt.s32.totalorder %s28, 2
      // Predicated region
      $region45: #{tpu_custom_call.1} parent=5 // pred_check
        %p366 = pneg %p365
      $region46: #{tpu_custom_call.1} parent=5 // pred_check_branch
        %368 = sbr.rel (%p366) target = $region48
      $region47: #{tpu_custom_call.1} parent=5 // pred_region
        // Predicated region
        $region49: #{tpu_custom_call.1} parent=47 // pred_check
          %p369 = pneg %p48
        $region50: #{tpu_custom_call.1} parent=47 // pred_check_branch
          %371 = sbr.rel (%p369) target = $region52
        $region51: #{tpu_custom_call.1} parent=47 // pred_region
          %p372 = scmp.lt.s32.totalorder %s28, 1
          %s373 = scalar_select %p372, %s28, 1
          %s374 = smul.addr %s373, 8
          %s375 = scalar_lea.vmem %s0, %s374
        $region52: #{tpu_custom_call.1} parent=47 // pred_fallthru
          _
      $region48: #{tpu_custom_call.1} parent=5 // pred_fallthru
        _
      %p376 = scmp.le.s32.totalorder 1, %s28
      %p377 = scmp.lt.s32.totalorder %s28, 3
      %p378 = pnand %p376, %p377
      %p379 = pneg %p378
      // Predicated region
      $region53: #{tpu_custom_call.1} parent=5 // pred_check
        _
      $region54: #{tpu_custom_call.1} parent=5 // pred_check_branch
        %381 = sbr.rel (%p378) target = $region56
      $region55: #{tpu_custom_call.1} parent=5 // pred_region
        %s382 = ssub.s32 %s28, 1
        %p383 = scmp.lt.s32.totalorder %s33, 1
        %s384 = scalar_select %p383, %s33, 1
        %s385 = smul.addr %s384, 8
        %s386 = scalar_lea.vmem %s0, %s385
        %p387 = pneg %p54
        %p388 = pneg %p51
        %p389 = pneg %p75
        %p390 = pneg %p72
        %p391 = pneg %p96
        %p392 = pneg %p93
        %p393 = pneg %p117
        %p394 = pneg %p114
        %p395 = pneg %p138
        %p396 = pneg %p135
        %p397 = pneg %p159
        %p398 = pneg %p156
        %p399 = pneg %p180
        %p400 = pneg %p177
        %p401 = pneg %p201
        %p402 = pneg %p198
        %p403 = pneg %p222
        %p404 = pneg %p219
        %p405 = pneg %p248
        %p406 = pneg %p245
        %s407 = sand.u32 %s235, 1
        %s408 = scalar_lea.sflag [#allocation3], %s407
        %s409 = sand.u32 %s235, 1
        %s410 = smul.addr %s409, 8
        %s411 = scalar_lea.vmem [#allocation2], %s410
        %p412 = pneg %p274
        %p413 = pneg %p271
        %s414 = sand.u32 %s33, 1
        %s415 = scalar_lea.sflag [#allocation5], %s414
        %s416 = sand.u32 %s261, 1
        %s417 = smul.addr %s416, 8
        %s418 = scalar_lea.vmem [#allocation4], %s417
        %p419 = pneg %p300
        %p420 = pneg %p297
        %s421 = sand.u32 %s33, 1
        %s422 = scalar_lea.sflag [#allocation5], %s421
        %s423 = sand.u32 %s287, 1
        %s424 = smul.addr %s423, 8
        %s425 = scalar_lea.vmem [#allocation6], %s424
        %p426 = pneg %p326
        %p427 = pneg %p323
        %s428 = sand.u32 %s313, 1
        %s429 = scalar_lea.sflag [#allocation8], %s428
        %s430 = sand.u32 %s313, 1
        %s431 = smul.addr %s430, 8
        %s432 = scalar_lea.vmem [#allocation7], %s431
        %p433 = scmp.lt.s32.totalorder %s33, 1
        %s434 = scalar_select %p433, %s33, 1
        %s435 = smul.addr %s434, 8
        %s436 = scalar_lea.vmem %s0, %s435
        %v437 = vld [vmem:[%s436] sm:$0xff]
        %vm438 = vcmask 261120
        %v439 = vsel %vm438, %v437, 0.0
        %440 = vadd.xlane.f32.xlu0 %v439
        %v441 = vpop.xlane.xlu0 %440
        %v442 = vrcp.pop 32.0
        %v443 = vmul.f32 %v441, %v442
        %v444 = vsub.f32 %v437, %v443
        %v445 = vmul.f32 %v444, %v444
        %v446 = vsel %vm438, %v445, 0.0
        %447 = vadd.xlane.f32.xlu0 %v446
        %v448 = vpop.xlane.xlu0 %447
        %v449 = vmul.f32 %v448, %v442
        %v450 = vadd.f32 %v449, 1e-05
        %v451 = vrsqrt.pop %v450
        %v452 = vmul.f32 %v444, %v451
        %v453 = vld [vmem:[%s1] sm:$0x1]
        %v455 = vlaneseq
        %v456 = vshrl.u32 %v455, 7
        %v457 = vsub.s32 0, %v456
        %v458 = vrot.slane %v453, %v457
        %v460 = vmul.f32 %v452, %v458
        %v461 = vld [vmem:[%s2] sm:$0x1]
        %v463 = vlaneseq
        %v464 = vshrl.u32 %v463, 7
        %v465 = vsub.s32 0, %v464
        %v466 = vrot.slane %v461, %v465
        %v468 = vadd.f32 %v460, %v466
        %v469 = vld [vmem:[%s3] sm:$0xff]
        %v470 = vld [vmem:[%s3 + $0x8] sm:$0xff]
        %v471 = vld [vmem:[%s3 + $0x10] sm:$0xff]
        %v472 = vld [vmem:[%s3 + $0x18] sm:$0xff]
        %v473 = vld [vmem:[%s5] sm:$0x1]
        %v475 = vlaneseq
        %v476 = vshrl.u32 %v475, 7
        %v477 = vsub.s32 0, %v476
        %v478 = vrot.slane %v473, %v477
        %v481 = vsel %vm438, %v468, 0
        %483 = vmatprep.subr.mxu0 0.0
        %484 = vmatpush1.msra.mxu0 %v469
        %485 = vmatprep.subr.mxu0 0.0
        %486 = vmatpush1.msra.mxu0 %v470
        %487 = vmatprep.subr.mxu0 0.0
        %488 = vmatpush1.msra.mxu0 %v471
        %489 = vmatprep.subr.mxu0 0.0
        %490 = vmatpush1.msra.mxu0 %v472
        %491 = vmatprep.subr.mxu0 0.0
        %492 = vmatpush1.msra.mxu0 0.0
        %493 = vmatprep.subr.mxu0 0.0
        %494 = vmatpush1.msra.mxu0 0.0
        %495 = vmatprep.subr.mxu0 0.0
        %496 = vmatpush1.msra.mxu0 0.0
        %497 = vmatprep.subr.mxu0 0.0
        %498 = vmatpush1.msra.mxu0 0.0
        %499 = vmatprep.subr.mxu0 0.0
        %500 = vmatpush1.msra.mxu0 0.0
        %501 = vmatprep.subr.mxu0 0.0
        %502 = vmatpush1.msra.mxu0 0.0
        %503 = vmatprep.subr.mxu0 0.0
        %504 = vmatpush1.msra.mxu0 0.0
        %505 = vmatprep.subr.mxu0 0.0
        %506 = vmatpush1.msra.mxu0 0.0
        %507 = vmatprep.subr.mxu0 0.0
        %508 = vmatpush1.msra.mxu0 0.0
        %509 = vmatprep.subr.mxu0 0.0
        %510 = vmatpush1.msra.mxu0 0.0
        %511 = vmatprep.subr.mxu0 0.0
        %512 = vmatpush1.msra.mxu0 0.0
        %513 = vmatprep.subr.mxu0 0.0
        %514 = vmatpush1.msra.mxu0 0.0
        %515 = vmatprep.subr.mxu0 0.0
        %516 = vmatpush1.msra.mxu0 0.0
        %517 = vmatprep.subr.mxu0 0.0
        %518 = vmatpush1.msra.mxu0 0.0
        %519 = vmatprep.subr.mxu0 0.0
        %520 = vmatpush1.msra.mxu0 0.0
        %521 = vmatprep.subr.mxu0 0.0
        %522 = vmatpush1.msra.mxu0 0.0
        %523 = vmatprep.subr.mxu0 0.0
        %524 = vmatpush1.msra.mxu0 0.0
        %525 = vmatprep.subr.mxu0 0.0
        %526 = vmatpush1.msra.mxu0 0.0
        %527 = vmatprep.subr.mxu0 0.0
        %528 = vmatpush1.msra.mxu0 0.0
        %529 = vmatprep.subr.mxu0 0.0
        %530 = vmatpush1.msra.mxu0 0.0
        %531 = vmatprep.subr.mxu0 0.0
        %532 = vmatpush1.msra.mxu0 0.0
        %533 = vmatprep.subr.mxu0 0.0
        %534 = vmatpush1.msra.mxu0 0.0
        %535 = vmatprep.subr.mxu0 0.0
        %536 = vmatpush1.msra.mxu0 0.0
        %537 = vmatprep.subr.mxu0 0.0
        %538 = vmatpush1.msra.mxu0 0.0
        %539 = vmatprep.subr.mxu0 0.0
        %540 = vmatpush1.msra.mxu0 0.0
        %541 = vmatprep.subr.mxu0 0.0
        %542 = vmatpush1.msra.mxu0 0.0
        %543 = vmatprep.subr.mxu0 0.0
        %544 = vmatpush1.msra.mxu0 0.0
        %545 = vmatprep.subr.mxu0 0.0
        %546 = vmatpush1.msra.mxu0 0.0
        %547 = vmatprep.mubr.f32.mxu0 0.0
        %548 = vmatmul.mubr.f32.gmra.mrb[0].mxu0 %v481
        %v549 = vpop.f32.mrb[0].mxu0
        %v550 = vadd.f32 %v478, %v549
        %v551 = vpop.f32.mrb[0].mxu0
        %552 = vdwg.mxu0
        %v553 = vld [vmem:[%s4] sm:$0xff]
        %v554 = vld [vmem:[%s4 + $0x8] sm:$0xff]
        %v555 = vld [vmem:[%s4 + $0x10] sm:$0xff]
        %v556 = vld [vmem:[%s4 + $0x18] sm:$0xff]
        %v557 = vld [vmem:[%s6] sm:$0x1]
        %v559 = vlaneseq
        %v560 = vshrl.u32 %v559, 7
        %v561 = vsub.s32 0, %v560
        %v562 = vrot.slane %v557, %v561
        %564 = vmatprep.subr.mxu0 0.0
        %565 = vmatpush1.msra.mxu0 %v553
        %566 = vmatprep.subr.mxu0 0.0
        %567 = vmatpush1.msra.mxu0 %v554
        %568 = vmatprep.subr.mxu0 0.0
        %569 = vmatpush1.msra.mxu0 %v555
        %570 = vmatprep.subr.mxu0 0.0
        %571 = vmatpush1.msra.mxu0 %v556
        %572 = vmatprep.subr.mxu0 0.0
        %573 = vmatpush1.msra.mxu0 0.0
        %574 = vmatprep.subr.mxu0 0.0
        %575 = vmatpush1.msra.mxu0 0.0
        %576 = vmatprep.subr.mxu0 0.0
        %577 = vmatpush1.msra.mxu0 0.0
        %578 = vmatprep.subr.mxu0 0.0
        %579 = vmatpush1.msra.mxu0 0.0
        %580 = vmatprep.subr.mxu0 0.0
        %581 = vmatpush1.msra.mxu0 0.0
        %582 = vmatprep.subr.mxu0 0.0
        %583 = vmatpush1.msra.mxu0 0.0
        %584 = vmatprep.subr.mxu0 0.0
        %585 = vmatpush1.msra.mxu0 0.0
        %586 = vmatprep.subr.mxu0 0.0
        %587 = vmatpush1.msra.mxu0 0.0
        %588 = vmatprep.subr.mxu0 0.0
        %589 = vmatpush1.msra.mxu0 0.0
        %590 = vmatprep.subr.mxu0 0.0
        %591 = vmatpush1.msra.mxu0 0.0
        %592 = vmatprep.subr.mxu0 0.0
        %593 = vmatpush1.msra.mxu0 0.0
        %594 = vmatprep.subr.mxu0 0.0
        %595 = vmatpush1.msra.mxu0 0.0
        %596 = vmatprep.subr.mxu0 0.0
        %597 = vmatpush1.msra.mxu0 0.0
        %598 = vmatprep.subr.mxu0 0.0
        %599 = vmatpush1.msra.mxu0 0.0
        %600 = vmatprep.subr.mxu0 0.0
        %601 = vmatpush1.msra.mxu0 0.0
        %602 = vmatprep.subr.mxu0 0.0
        %603 = vmatpush1.msra.mxu0 0.0
        %604 = vmatprep.subr.mxu0 0.0
        %605 = vmatpush1.msra.mxu0 0.0
        %606 = vmatprep.subr.mxu0 0.0
        %607 = vmatpush1.msra.mxu0 0.0
        %608 = vmatprep.subr.mxu0 0.0
        %609 = vmatpush1.msra.mxu0 0.0
        %610 = vmatprep.subr.mxu0 0.0
        %611 = vmatpush1.msra.mxu0 0.0
        %612 = vmatprep.subr.mxu0 0.0
        %613 = vmatpush1.msra.mxu0 0.0
        %614 = vmatprep.subr.mxu0 0.0
        %615 = vmatpush1.msra.mxu0 0.0
        %616 = vmatprep.subr.mxu0 0.0
        %617 = vmatpush1.msra.mxu0 0.0
        %618 = vmatprep.subr.mxu0 0.0
        %619 = vmatpush1.msra.mxu0 0.0
        %620 = vmatprep.subr.mxu0 0.0
        %621 = vmatpush1.msra.mxu0 0.0
        %622 = vmatprep.subr.mxu0 0.0
        %623 = vmatpush1.msra.mxu0 0.0
        %624 = vmatprep.subr.mxu0 0.0
        %625 = vmatpush1.msra.mxu0 0.0
        %626 = vmatprep.subr.mxu0 0.0
        %627 = vmatpush1.msra.mxu0 0.0
        %628 = vmatprep.mubr.f32.mxu0 0.0
        %629 = vmatmul.mubr.f32.gmra.mrb[0].mxu0 %v481
        %v630 = vpop.f32.mrb[0].mxu0
        %v631 = vadd.f32 %v562, %v630
        %v632 = vpop.f32.mrb[0].mxu0
        %633 = vdwg.mxu0
        %vm634 = vcmask 130048
        %635 = vst.msk [vmem:[%s411] sm:$0xff] %vm634, %v550
        %636 = vst.msk [vmem:[%s418] sm:$0xff] %vm634, %v631
        %v637 = vld [vmem:[%s7] sm:$0xff]
        %v638 = vld [vmem:[%s7 + $0x8] sm:$0xff]
        %v639 = vld [vmem:[%s8] sm:$0x1]
        %v641 = vlaneseq
        %v642 = vshrl.u32 %v641, 7
        %v643 = vsub.s32 0, %v642
        %v644 = vrot.slane %v639, %v643
        %v647 = vsel %vm634, %v550, 0
        %649 = vmatprep.subr.mxu0 0.0
        %650 = vmatpush1.msra.mxu0 %v637
        %651 = vmatprep.subr.mxu0 0.0
        %652 = vmatpush1.msra.mxu0 %v638
        %653 = vmatprep.subr.mxu0 0.0
        %654 = vmatpush1.msra.mxu0 0.0
        %655 = vmatprep.subr.mxu0 0.0
        %656 = vmatpush1.msra.mxu0 0.0
        %657 = vmatprep.subr.mxu0 0.0
        %658 = vmatpush1.msra.mxu0 0.0
        %659 = vmatprep.subr.mxu0 0.0
        %660 = vmatpush1.msra.mxu0 0.0
        %661 = vmatprep.subr.mxu0 0.0
        %662 = vmatpush1.msra.mxu0 0.0
        %663 = vmatprep.subr.mxu0 0.0
        %664 = vmatpush1.msra.mxu0 0.0
        %665 = vmatprep.subr.mxu0 0.0
        %666 = vmatpush1.msra.mxu0 0.0
        %667 = vmatprep.subr.mxu0 0.0
        %668 = vmatpush1.msra.mxu0 0.0
        %669 = vmatprep.subr.mxu0 0.0
        %670 = vmatpush1.msra.mxu0 0.0
        %671 = vmatprep.subr.mxu0 0.0
        %672 = vmatpush1.msra.mxu0 0.0
        %673 = vmatprep.subr.mxu0 0.0
        %674 = vmatpush1.msra.mxu0 0.0
        %675 = vmatprep.subr.mxu0 0.0
        %676 = vmatpush1.msra.mxu0 0.0
        %677 = vmatprep.subr.mxu0 0.0
        %678 = vmatpush1.msra.mxu0 0.0
        %679 = vmatprep.subr.mxu0 0.0
        %680 = vmatpush1.msra.mxu0 0.0
        %681 = vmatprep.subr.mxu0 0.0
        %682 = vmatpush1.msra.mxu0 0.0
        %683 = vmatprep.subr.mxu0 0.0
        %684 = vmatpush1.msra.mxu0 0.0
        %685 = vmatprep.subr.mxu0 0.0
        %686 = vmatpush1.msra.mxu0 0.0
        %687 = vmatprep.subr.mxu0 0.0
        %688 = vmatpush1.msra.mxu0 0.0
        %689 = vmatprep.subr.mxu0 0.0
        %690 = vmatpush1.msra.mxu0 0.0
        %691 = vmatprep.subr.mxu0 0.0
        %692 = vmatpush1.msra.mxu0 0.0
        %693 = vmatprep.subr.mxu0 0.0
        %694 = vmatpush1.msra.mxu0 0.0
        %695 = vmatprep.subr.mxu0 0.0
        %696 = vmatpush1.msra.mxu0 0.0
        %697 = vmatprep.subr.mxu0 0.0
        %698 = vmatpush1.msra.mxu0 0.0
        %699 = vmatprep.subr.mxu0 0.0
        %700 = vmatpush1.msra.mxu0 0.0
        %701 = vmatprep.subr.mxu0 0.0
        %702 = vmatpush1.msra.mxu0 0.0
        %703 = vmatprep.subr.mxu0 0.0
        %704 = vmatpush1.msra.mxu0 0.0
        %705 = vmatprep.subr.mxu0 0.0
        %706 = vmatpush1.msra.mxu0 0.0
        %707 = vmatprep.subr.mxu0 0.0
        %708 = vmatpush1.msra.mxu0 0.0
        %709 = vmatprep.subr.mxu0 0.0
        %710 = vmatpush1.msra.mxu0 0.0
        %711 = vmatprep.subr.mxu0 0.0
        %712 = vmatpush1.msra.mxu0 0.0
        %713 = vmatprep.mubr.f32.mxu0 0.0
        %714 = vmatmul.mubr.f32.gmra.mrb[0].mxu0 %v647
        %v715 = vpop.f32.mrb[0].mxu0
        %v716 = vadd.f32 %v644, %v715
        %v717 = vpop.f32.mrb[0].mxu0
        %718 = vdwg.mxu0
        %vm719 = vcmask 64512
        %720 = vst.msk [vmem:[%s425] sm:$0xff] %vm719, %v716
        %v721 = vld [vmem:[%s7] sm:$0xff]
        %v722 = vld [vmem:[%s7 + $0x8] sm:$0xff]
        %v724 = vsel %vm634, %v631, 0
        %726 = vmatprep.subr.mxu0 0.0
        %727 = vmatpush1.msra.mxu0 %v721
        %728 = vmatprep.subr.mxu0 0.0
        %729 = vmatpush1.msra.mxu0 %v722
        %730 = vmatprep.subr.mxu0 0.0
        %731 = vmatpush1.msra.mxu0 0.0
        %732 = vmatprep.subr.mxu0 0.0
        %733 = vmatpush1.msra.mxu0 0.0
        %734 = vmatprep.subr.mxu0 0.0
        %735 = vmatpush1.msra.mxu0 0.0
        %736 = vmatprep.subr.mxu0 0.0
        %737 = vmatpush1.msra.mxu0 0.0
        %738 = vmatprep.subr.mxu0 0.0
        %739 = vmatpush1.msra.mxu0 0.0
        %740 = vmatprep.subr.mxu0 0.0
        %741 = vmatpush1.msra.mxu0 0.0
        %742 = vmatprep.subr.mxu0 0.0
        %743 = vmatpush1.msra.mxu0 0.0
        %744 = vmatprep.subr.mxu0 0.0
        %745 = vmatpush1.msra.mxu0 0.0
        %746 = vmatprep.subr.mxu0 0.0
        %747 = vmatpush1.msra.mxu0 0.0
        %748 = vmatprep.subr.mxu0 0.0
        %749 = vmatpush1.msra.mxu0 0.0
        %750 = vmatprep.subr.mxu0 0.0
        %751 = vmatpush1.msra.mxu0 0.0
        %752 = vmatprep.subr.mxu0 0.0
        %753 = vmatpush1.msra.mxu0 0.0
        %754 = vmatprep.subr.mxu0 0.0
        %755 = vmatpush1.msra.mxu0 0.0
        %756 = vmatprep.subr.mxu0 0.0
        %757 = vmatpush1.msra.mxu0 0.0
        %758 = vmatprep.subr.mxu0 0.0
        %759 = vmatpush1.msra.mxu0 0.0
        %760 = vmatprep.subr.mxu0 0.0
        %761 = vmatpush1.msra.mxu0 0.0
        %762 = vmatprep.subr.mxu0 0.0
        %763 = vmatpush1.msra.mxu0 0.0
        %764 = vmatprep.subr.mxu0 0.0
        %765 = vmatpush1.msra.mxu0 0.0
        %766 = vmatprep.subr.mxu0 0.0
        %767 = vmatpush1.msra.mxu0 0.0
        %768 = vmatprep.subr.mxu0 0.0
        %769 = vmatpush1.msra.mxu0 0.0
        %770 = vmatprep.subr.mxu0 0.0
        %771 = vmatpush1.msra.mxu0 0.0
        %772 = vmatprep.subr.mxu0 0.0
        %773 = vmatpush1.msra.mxu0 0.0
        %774 = vmatprep.subr.mxu0 0.0
        %775 = vmatpush1.msra.mxu0 0.0
        %776 = vmatprep.subr.mxu0 0.0
        %777 = vmatpush1.msra.mxu0 0.0
        %778 = vmatprep.subr.mxu0 0.0
        %779 = vmatpush1.msra.mxu0 0.0
        %780 = vmatprep.subr.mxu0 0.0
        %781 = vmatpush1.msra.mxu0 0.0
        %782 = vmatprep.subr.mxu0 0.0
        %783 = vmatpush1.msra.mxu0 0.0
        %784 = vmatprep.subr.mxu0 0.0
        %785 = vmatpush1.msra.mxu0 0.0
        %786 = vmatprep.subr.mxu0 0.0
        %787 = vmatpush1.msra.mxu0 0.0
        %788 = vmatprep.subr.mxu0 0.0
        %789 = vmatpush1.msra.mxu0 0.0
        %790 = vmatprep.mubr.f32.mxu0 0.0
        %791 = vmatmul.mubr.f32.gmra.mrb[0].mxu0 %v724
        %v792 = vpop.f32.mrb[0].mxu0
        %v793 = vadd.f32 0.0, %v792
        %v794 = vpop.f32.mrb[0].mxu0
        %795 = vdwg.mxu0
        %796 = vst.msk [vmem:[%s432] sm:$0xff] %vm719, %v793
        %s797 = sand.u32 %s235, 1
        %s798 = scalar_lea.sflag [#allocation3], %s797
        %s799 = sand.u32 %s235, 1
        %s800 = smul.addr %s799, 8
        %s801 = scalar_lea.vmem [#allocation2], %s800
        %s802 = sand.u32 %s33, 1
        %s803 = scalar_lea.sflag [#allocation5], %s802
        %s804 = sand.u32 %s261, 1
        %s805 = smul.addr %s804, 8
        %s806 = scalar_lea.vmem [#allocation4], %s805
        %s807 = sand.u32 %s33, 1
        %s808 = scalar_lea.sflag [#allocation5], %s807
        %s809 = sand.u32 %s287, 1
        %s810 = smul.addr %s809, 8
        %s811 = scalar_lea.vmem [#allocation6], %s810
        %s812 = sand.u32 %s313, 1
        %s813 = scalar_lea.sflag [#allocation8], %s812
        %s814 = sand.u32 %s313, 1
        %s815 = smul.addr %s814, 8
        %s816 = scalar_lea.vmem [#allocation7], %s815
        // Predicated region
        $region57: #{tpu_custom_call.1} parent=55 // pred_check
          %p817 = pneg %p245
        $region58: #{tpu_custom_call.1} parent=55 // pred_check_branch
          %819 = sbr.rel (%p817) target = $region60
        $region59: #{tpu_custom_call.1} parent=55 // pred_region
          %s821 = ssub.s32 128, 128
          %822 = vsyncadd %s798, %s821
          %s823 = smul.addr %s33, 128
          %s824 = scalar_lea.hbm %s9, %s823
          %s826 = sshll.u32 %s801, 4
          %s827 = int_to_ptr.vmem [resolvable:$true] %s826
          %829 = dma.vmem_to_hbm [thread:$0]  %s827, 128, %s824, %s798
        $region60: #{tpu_custom_call.1} parent=55 // pred_fallthru
          _
        // Predicated region
        $region61: #{tpu_custom_call.1} parent=55 // pred_check
          %p830 = pneg %p271
        $region62: #{tpu_custom_call.1} parent=55 // pred_check_branch
          %832 = sbr.rel (%p830) target = $region64
        $region63: #{tpu_custom_call.1} parent=55 // pred_region
          %s834 = ssub.s32 128, 128
          %835 = vsyncadd %s803, %s834
          %s836 = smul.addr %s33, 128
          %s837 = scalar_lea.hbm %s10, %s836
          %s839 = sshll.u32 %s806, 4
          %s840 = int_to_ptr.vmem [resolvable:$true] %s839
          %842 = dma.vmem_to_hbm [thread:$0]  %s840, 128, %s837, %s803
        $region64: #{tpu_custom_call.1} parent=55 // pred_fallthru
          _
        // Predicated region
        $region65: #{tpu_custom_call.1} parent=55 // pred_check
          %p843 = pneg %p297
        $region66: #{tpu_custom_call.1} parent=55 // pred_check_branch
          %845 = sbr.rel (%p843) target = $region68
        $region67: #{tpu_custom_call.1} parent=55 // pred_region
          %s847 = ssub.s32 128, 128
          %848 = vsyncadd %s808, %s847
          %s849 = smul.addr %s33, 128
          %s850 = scalar_lea.hbm %s11, %s849
          %s852 = sshll.u32 %s811, 4
          %s853 = int_to_ptr.vmem [resolvable:$true] %s852
          %855 = dma.vmem_to_hbm [thread:$0]  %s853, 128, %s850, %s808
        $region68: #{tpu_custom_call.1} parent=55 // pred_fallthru
          _
        // Predicated region
        $region69: #{tpu_custom_call.1} parent=55 // pred_check
          %p856 = pneg %p323
        $region70: #{tpu_custom_call.1} parent=55 // pred_check_branch
          %858 = sbr.rel (%p856) target = $region72
        $region71: #{tpu_custom_call.1} parent=55 // pred_region
          %s860 = ssub.s32 128, 128
          %861 = vsyncadd %s813, %s860
          %s862 = smul.addr %s33, 128
          %s863 = scalar_lea.hbm %s12, %s862
          %s865 = sshll.u32 %s816, 4
          %s866 = int_to_ptr.vmem [resolvable:$true] %s865
          %868 = dma.vmem_to_hbm [thread:$0]  %s866, 128, %s863, %s813
        $region72: #{tpu_custom_call.1} parent=55 // pred_fallthru
          _
      $region56: #{tpu_custom_call.1} parent=5 // pred_fallthru
        _
      %p869 = scmp.le.s32.totalorder 2, %s28
      // Predicated region
      $region73: #{tpu_custom_call.1} parent=5 // pred_check
        %p870 = pneg %p869
      $region74: #{tpu_custom_call.1} parent=5 // pred_check_branch
        %872 = sbr.rel (%p870) target = $region76
      $region75: #{tpu_custom_call.1} parent=5 // pred_region
        %s873 = ssub.s32 %s28, 2
        // Predicated region
        $region77: #{tpu_custom_call.1} parent=75 // pred_check
          %p874 = pneg %p251
        $region78: #{tpu_custom_call.1} parent=75 // pred_check_branch
          %876 = sbr.rel (%p874) target = $region80
        $region79: #{tpu_custom_call.1} parent=75 // pred_region
          %s877 = sand.u32 %s236, 1
          %s878 = scalar_lea.sflag [#allocation3], %s877
          %s879 = sand.u32 %s236, 1
          %s880 = smul.addr %s879, 8
          %s881 = scalar_lea.vmem [#allocation2], %s880
          %882 = dma.done %s878, 128
        $region80: #{tpu_custom_call.1} parent=75 // pred_fallthru
          _
        // Predicated region
        $region81: #{tpu_custom_call.1} parent=75 // pred_check
          %p883 = pneg %p277
        $region82: #{tpu_custom_call.1} parent=75 // pred_check_branch
          %885 = sbr.rel (%p883) target = $region84
        $region83: #{tpu_custom_call.1} parent=75 // pred_region
          %s886 = sand.u32 %s34, 1
          %s887 = scalar_lea.sflag [#allocation5], %s886
          %s888 = sand.u32 %s262, 1
          %s889 = smul.addr %s888, 8
          %s890 = scalar_lea.vmem [#allocation4], %s889
          %891 = dma.done %s887, 128
        $region84: #{tpu_custom_call.1} parent=75 // pred_fallthru
          _
        // Predicated region
        $region85: #{tpu_custom_call.1} parent=75 // pred_check
          %p892 = pneg %p303
        $region86: #{tpu_custom_call.1} parent=75 // pred_check_branch
          %894 = sbr.rel (%p892) target = $region88
        $region87: #{tpu_custom_call.1} parent=75 // pred_region
          %s895 = sand.u32 %s34, 1
          %s896 = scalar_lea.sflag [#allocation5], %s895
          %s897 = sand.u32 %s288, 1
          %s898 = smul.addr %s897, 8
          %s899 = scalar_lea.vmem [#allocation6], %s898
          %900 = dma.done %s896, 128
        $region88: #{tpu_custom_call.1} parent=75 // pred_fallthru
          _
        // Predicated region
        $region89: #{tpu_custom_call.1} parent=75 // pred_check
          %p901 = pneg %p329
        $region90: #{tpu_custom_call.1} parent=75 // pred_check_branch
          %903 = sbr.rel (%p901) target = $region92
        $region91: #{tpu_custom_call.1} parent=75 // pred_region
          %s904 = sand.u32 %s314, 1
          %s905 = scalar_lea.sflag [#allocation8], %s904
          %s906 = sand.u32 %s314, 1
          %s907 = smul.addr %s906, 8
          %s908 = scalar_lea.vmem [#allocation7], %s907
          %909 = dma.done %s905, 128
        $region92: #{tpu_custom_call.1} parent=75 // pred_fallthru
          _
      $region76: #{tpu_custom_call.1} parent=5 // pred_fallthru
        _
    $region6: #{tpu_custom_call.1} parent=1 // loop_footer
      %s32 = sadd.s32 1, %s28
    $region7: #{tpu_custom_call.1} parent=1 // loop_footer_branch
      %27 = sbr.rel target = $region3
    $region8: #{tpu_custom_call.1} parent=1 // loop_exit
      _
    %910 = vsyncpa [#allocation3], 1
    %s911 = scalar_lea.sflag [#allocation3], 1
    %912 = vsyncpa %s911, 1
    %913 = vsyncpa [#allocation5], 1
    %s914 = scalar_lea.sflag [#allocation5], 1
    %915 = vsyncpa %s914, 1
    %916 = vsyncpa [#allocation8], 1
    %s917 = scalar_lea.sflag [#allocation8], 1
    %918 = vsyncpa %s917, 1

</llo_original>
